<compile_context>
chip_gen: v7x
topology: tpu7x:2x2x1
jax: 0.10.0
libtpu: 0.0.40
codegen_flags: <defaults>
</compile_context>

<pallas_src>
import jax
import jax.numpy as jnp
from jax.experimental import pallas as pl
from jax.experimental.pallas import tpu as pltpu


def _round_up(n, m):
    return ((n + m - 1) // m) * m


def _damping_kernel(x_ref, p_ref, w2_ref, w3_ref, out_ref):
    # Transposed layout: batch on the 128-lane axis, features on sublanes.
    x = x_ref[...]                     # (2, TB)
    x0 = x[0:1, :]                     # (1, TB)
    x1 = x[1:2, :]                     # (1, TB)

    # Packed parameters: columns of a single (32, 8) array.
    p = p_ref[...]                     # (32, 8)
    w1a = p[:, 0:1]                    # (32, 1)  layer-1 weights for x0
    w1b = p[:, 1:2]                    # (32, 1)  layer-1 weights for x1
    b1 = p[:, 2:3]                     # (32, 1)
    b2 = p[:, 3:4]                     # (32, 1)
    b3 = p[0:3, 4:5]                   # (3, 1)
    dmin = p[0:2, 5:6]                 # (2, 1)

    # Layer 1 (K=2 contraction): explicit VPU FMAs (outer products).
    h1 = jnp.tanh(w1a * x0 + w1b * x1 + b1)                                  # (32, TB)

    # Layer 2: fused block-diagonal (32,32) matmul, lane-dense N = TB.
    h2 = jnp.tanh(
        jnp.dot(w2_ref[...], h1, preferred_element_type=jnp.float32) + b2
    )                                                                         # (32, TB)

    # Layer 3: fused (3,32) @ (32,TB) -> rows [diag0_pre, diag1_pre, offdiag].
    h3 = jnp.dot(w3_ref[...], h2, preferred_element_type=jnp.float32) + b3    # (3, TB)

    # d3r = (relu(d3) + damp_min) * x (per feature), c = offdiag output.
    a = (jnp.maximum(h3[0:1, :], 0.0) + dmin[0:1, :]) * x0                    # (1, TB)
    b = (jnp.maximum(h3[1:2, :], 0.0) + dmin[1:2, :]) * x1                    # (1, TB)
    c = h3[2:3, :]                                                            # (1, TB)

    # L = [[a, 0], [c, b]];  D = (L @ L.T) @ x  unrolled for N=2.
    # Pure lane-wise VPU work; two full-row (lane-dense) stores.
    ac = a * c
    out_ref[0:1, :] = a * a * x0 + ac * x1
    out_ref[1:2, :] = ac * x0 + (c * c + b * b) * x1


def _pack_params(params):
    """Fuse the two MLP branches and pack the tiny tensors once, host-side."""
    f32 = jnp.float32
    w1t = jnp.concatenate([params["w_d1"], params["w_o1"]], axis=1).T.astype(f32)  # (32, 2)

    # Seven tiny vectors packed into a single (32, 8) array (one BlockSpec).
    pcols = jnp.zeros((32, 8), f32)
    pcols = pcols.at[:, 0].set(w1t[:, 0])
    pcols = pcols.at[:, 1].set(w1t[:, 1])
    pcols = pcols.at[:, 2].set(jnp.concatenate([params["b_d1"], params["b_o1"]]).astype(f32))
    pcols = pcols.at[:, 3].set(jnp.concatenate([params["b_d2"], params["b_o2"]]).astype(f32))
    pcols = pcols.at[0:3, 4].set(jnp.concatenate([params["b_d3"], params["b_o3"]]).astype(f32))
    pcols = pcols.at[0:2, 5].set(params["damp_min"].astype(f32))

    w2f = jnp.zeros((32, 32), f32)
    w2f = w2f.at[0:16, 0:16].set(params["w_d2"].T.astype(f32))
    w2f = w2f.at[16:32, 16:32].set(params["w_o2"].T.astype(f32))

    w3f = jnp.zeros((3, 32), f32)
    w3f = w3f.at[0:2, 0:16].set(params["w_d3"].T.astype(f32))
    w3f = w3f.at[2:3, 16:32].set(params["w_o3"].T.astype(f32))
    return pcols, w2f, w3f


def damping_forward_t(x_t, params, *, max_tile=16384):
    """Transposed entry point: x_t is (2, B) float32, returns (2, B) float32.

    Callers that keep the (2, B) lane-dense layout avoid the (B,2)<->(2,B)
    transpose passes entirely.
    """
    f32 = jnp.float32
    B = x_t.shape[1]
    pcols, w2f, w3f = _pack_params(params)

    # Tile choice: big enough to amortize the ~0.35 us/step pipeline overhead,
    # small enough to fit the 32 MiB scoped-VMEM limit, and split in >= 2 steps
    # whenever possible so v7x's two TensorCores both get work.
    half = (B + 1) // 2
    tb = min(max_tile, _round_up(max(half, 1), 128))
    bp = _round_up(B, tb)

    x_p = jnp.pad(x_t.astype(f32), ((0, 0), (0, bp - B)))

    def resident(shape):
        return pl.BlockSpec(shape, lambda i: (0, 0))

    out_t = pl.pallas_call(
        _damping_kernel,
        out_shape=jax.ShapeDtypeStruct((2, bp), f32),
        grid_spec=pltpu.PrefetchScalarGridSpec(
            num_scalar_prefetch=0,
            grid=(bp // tb,),
            in_specs=[
                pl.BlockSpec((2, tb), lambda i: (0, i)),   # x tile (lane-dense)
                resident((32, 8)),                         # packed small params
                resident((32, 32)),                        # fused layer-2 weights
                resident((3, 32)),                         # fused layer-3 weights
            ],
            out_specs=pl.BlockSpec((2, tb), lambda i: (0, i)),
        ),
        compiler_params=pltpu.CompilerParams(
            dimension_semantics=("parallel",),       # shard batch tiles across TCs (v7x)
            vmem_limit_bytes=32 * 1024 * 1024,       # safe on v7x (64 MiB physical)
        ),
    )(x_p, pcols, w2f, w3f)

    return out_t[:, :B]


def damping_forward(x, params, *, max_tile=16384):
    """Module-layout entry point: x is (B, 2), returns (B, 2).

    Wrap this in jax.jit so the transpose/pad/un-transpose fuse with the kernel
    in a single XLA program (see __main__)."""
    return damping_forward_t(x.T, params, max_tile=max_tile).T


def damping_reference(x, p):
    """Pure-JAX reference matching the PyTorch forward exactly."""
    d1t = jnp.tanh(x @ p["w_d1"] + p["b_d1"])
    d2t = jnp.tanh(d1t @ p["w_d2"] + p["b_d2"])
    d3 = d2t @ p["w_d3"] + p["b_d3"]
    d3r = (jax.nn.relu(d3) + p["damp_min"]) * x
    o1t = jnp.tanh(x @ p["w_o1"] + p["b_o1"])
    o2t = jnp.tanh(o1t @ p["w_o2"] + p["b_o2"])
    o3 = o2t @ p["w_o3"] + p["b_o3"]
    a, b = d3r[:, 0], d3r[:, 1]
    c = o3[:, 0]
    x0, x1 = x[:, 0], x[:, 1]
    D0 = a * a * x0 + a * c * x1
    D1 = a * c * x0 + (c * c + b * b) * x1
    return jnp.stack([D0, D1], axis=-1)


def init_params(key):
    ks = jax.random.split(key, 12)
    return {
        "w_d1": jax.random.normal(ks[0], (2, 16), jnp.float32),
        "w_d2": jax.random.normal(ks[1], (16, 16), jnp.float32),
        "w_d3": jax.random.normal(ks[2], (16, 2), jnp.float32),
        "w_o1": jax.random.normal(ks[3], (2, 16), jnp.float32),
        "w_o2": jax.random.normal(ks[4], (16, 16), jnp.float32),
        "w_o3": jax.random.normal(ks[5], (16, 1), jnp.float32),
        "b_d1": jax.random.normal(ks[6], (16,), jnp.float32),
        "b_d2": jax.random.normal(ks[7], (16,), jnp.float32),
        "b_d3": jax.random.normal(ks[8], (2,), jnp.float32),
        "b_o1": jax.random.normal(ks[9], (16,), jnp.float32),
        "b_o2": jax.random.normal(ks[10], (16,), jnp.float32),
        "b_o3": jax.random.normal(ks[11], (1,), jnp.float32),
        "damp_min": jnp.array([0.001, 0.001], jnp.float32),
    }


if __name__ == "__main__":
    key = jax.random.PRNGKey(0)
    k_x, k_x2, k_p = jax.random.split(key, 3)
    params = init_params(k_p)

    # One jit over pad + transpose + kernel + un-transpose: XLA fuses the layout
    # plumbing with the pallas_call instead of running extra HBM passes.
    fwd = jax.jit(damping_forward)

    # Small case (single grid step).
    B = 8
    x = jax.random.normal(k_x, (B, 2), jnp.float32)
    out = jax.block_until_ready(fwd(x, params))
    ref = jax.block_until_ready(damping_reference(x, params))
    assert out.shape == (B, 2) and out.dtype == jnp.float32
    assert jnp.allclose(out, ref, atol=1e-4, rtol=1e-4), (out, ref)

    # Slightly larger case: exercises >= 2 grid steps (megacore split) + padding.
    B2 = 300
    x2 = jax.random.normal(k_x2, (B2, 2), jnp.float32)
    out2 = jax.block_until_ready(fwd(x2, params))
    ref2 = jax.block_until_ready(damping_reference(x2, params))
    assert out2.shape == (B2, 2) and out2.dtype == jnp.float32
    assert jnp.allclose(out2, ref2, atol=1e-4, rtol=1e-4)

    print("KERNEL_OK")
</pallas_src>

<mosaic_0001>
module attributes {stable_mosaic.version = 11 : i64} {
  func.func @_damping_kernel(%arg0: i32, %arg1: memref<2x128xf32, #tpu.memory_space<vmem>>, %arg2: memref<32x8xf32, #tpu.memory_space<vmem>>, %arg3: memref<32x32xf32, #tpu.memory_space<vmem>>, %arg4: memref<3x32xf32, #tpu.memory_space<vmem>>, %arg5: memref<2x128xf32, #tpu.memory_space<vmem>>) attributes {dimension_semantics = [#tpu.dimension_semantics<parallel>], iteration_bounds = array<i64: 1>, scalar_prefetch = 0 : i64, scratch_operands = 0 : i64, tpu.core_type = #tpu.core_type<tc>, window_params = [{transform_indices = @transform_0, window_bounds = array<i64: 2, 128>}, {pipeline_mode = #tpu.pipeline_mode<synchronous>, transform_indices = @transform_1, window_bounds = array<i64: 32, 8>}, {pipeline_mode = #tpu.pipeline_mode<synchronous>, transform_indices = @transform_2, window_bounds = array<i64: 32, 32>}, {pipeline_mode = #tpu.pipeline_mode<synchronous>, transform_indices = @transform_3, window_bounds = array<i64: 3, 32>}, {transform_indices = @transform_4, window_bounds = array<i64: 2, 128>}]} {
    %c0 = arith.constant 0 : index
    %c0_0 = arith.constant 0 : index
    %0 = vector.load %arg1[%c0, %c0_0] : memref<2x128xf32, #tpu.memory_space<vmem>>, vector<2x128xf32>
    %1 = vector.extract_strided_slice %0 {offsets = [0, 0], sizes = [1, 128], strides = [1, 1]} : vector<2x128xf32> to vector<1x128xf32>
    %2 = vector.extract_strided_slice %0 {offsets = [1, 0], sizes = [1, 128], strides = [1, 1]} : vector<2x128xf32> to vector<1x128xf32>
    %c0_1 = arith.constant 0 : index
    %c0_2 = arith.constant 0 : index
    %3 = vector.load %arg2[%c0_1, %c0_2] : memref<32x8xf32, #tpu.memory_space<vmem>>, vector<32x8xf32>
    %4 = vector.extract_strided_slice %3 {offsets = [0, 0], sizes = [32, 1], strides = [1, 1]} : vector<32x8xf32> to vector<32x1xf32>
    %5 = vector.extract_strided_slice %3 {offsets = [0, 1], sizes = [32, 1], strides = [1, 1]} : vector<32x8xf32> to vector<32x1xf32>
    %6 = vector.extract_strided_slice %3 {offsets = [0, 2], sizes = [32, 1], strides = [1, 1]} : vector<32x8xf32> to vector<32x1xf32>
    %7 = vector.extract_strided_slice %3 {offsets = [0, 3], sizes = [32, 1], strides = [1, 1]} : vector<32x8xf32> to vector<32x1xf32>
    %8 = vector.extract_strided_slice %3 {offsets = [0, 4], sizes = [3, 1], strides = [1, 1]} : vector<32x8xf32> to vector<3x1xf32>
    %9 = vector.extract_strided_slice %3 {offsets = [0, 5], sizes = [2, 1], strides = [1, 1]} : vector<32x8xf32> to vector<2x1xf32>
    %10 = vector.broadcast %4 : vector<32x1xf32> to vector<32x128xf32>
    %11 = vector.broadcast %1 : vector<1x128xf32> to vector<32x128xf32>
    %12 = arith.mulf %10, %11 : vector<32x128xf32>
    %13 = vector.broadcast %5 : vector<32x1xf32> to vector<32x128xf32>
    %14 = vector.broadcast %2 : vector<1x128xf32> to vector<32x128xf32>
    %15 = arith.mulf %13, %14 : vector<32x128xf32>
    %16 = arith.addf %12, %15 : vector<32x128xf32>
    %17 = vector.broadcast %6 : vector<32x1xf32> to vector<32x128xf32>
    %18 = arith.addf %16, %17 : vector<32x128xf32>
    %19 = math.tanh %18 : vector<32x128xf32>
    %c0_3 = arith.constant 0 : index
    %c0_4 = arith.constant 0 : index
    %20 = vector.load %arg3[%c0_3, %c0_4] : memref<32x32xf32, #tpu.memory_space<vmem>>, vector<32x32xf32>
    %cst = arith.constant dense<0.000000e+00> : vector<32x128xf32>
    %21 = tpu.matmul %20, %19, %cst {dimension_numbers = #tpu.dot_dimension_numbers<[1], [0], [0], [1], [0, 0, 1, 1], [], []>} : vector<32x32xf32>, vector<32x128xf32>, vector<32x128xf32> -> vector<32x128xf32>
    %22 = vector.broadcast %7 : vector<32x1xf32> to vector<32x128xf32>
    %23 = arith.addf %21, %22 : vector<32x128xf32>
    %24 = math.tanh %23 : vector<32x128xf32>
    %c0_5 = arith.constant 0 : index
    %c0_6 = arith.constant 0 : index
    %25 = vector.load %arg4[%c0_5, %c0_6] : memref<3x32xf32, #tpu.memory_space<vmem>>, vector<3x32xf32>
    %cst_7 = arith.constant dense<0.000000e+00> : vector<3x128xf32>
    %26 = tpu.matmul %25, %24, %cst_7 {dimension_numbers = #tpu.dot_dimension_numbers<[1], [0], [0], [1], [0, 0, 1, 1], [], []>} : vector<3x32xf32>, vector<32x128xf32>, vector<3x128xf32> -> vector<3x128xf32>
    %27 = vector.broadcast %8 : vector<3x1xf32> to vector<3x128xf32>
    %28 = arith.addf %26, %27 : vector<3x128xf32>
    %29 = vector.extract_strided_slice %28 {offsets = [0, 0], sizes = [1, 128], strides = [1, 1]} : vector<3x128xf32> to vector<1x128xf32>
    %cst_8 = arith.constant 0.000000e+00 : f32
    %30 = vector.broadcast %cst_8 : f32 to vector<1x128xf32>
    %31 = arith.maximumf %29, %30 : vector<1x128xf32>
    %32 = vector.extract_strided_slice %9 {offsets = [0, 0], sizes = [1, 1], strides = [1, 1]} : vector<2x1xf32> to vector<1x1xf32>
    %33 = vector.broadcast %32 : vector<1x1xf32> to vector<1x128xf32>
    %34 = arith.addf %31, %33 : vector<1x128xf32>
    %35 = arith.mulf %34, %1 : vector<1x128xf32>
    %36 = vector.extract_strided_slice %28 {offsets = [1, 0], sizes = [1, 128], strides = [1, 1]} : vector<3x128xf32> to vector<1x128xf32>
    %cst_9 = arith.constant 0.000000e+00 : f32
    %37 = vector.broadcast %cst_9 : f32 to vector<1x128xf32>
    %38 = arith.maximumf %36, %37 : vector<1x128xf32>
    %39 = vector.extract_strided_slice %9 {offsets = [1, 0], sizes = [1, 1], strides = [1, 1]} : vector<2x1xf32> to vector<1x1xf32>
    %40 = vector.broadcast %39 : vector<1x1xf32> to vector<1x128xf32>
    %41 = arith.addf %38, %40 : vector<1x128xf32>
    %42 = arith.mulf %41, %2 : vector<1x128xf32>
    %43 = vector.extract_strided_slice %28 {offsets = [2, 0], sizes = [1, 128], strides = [1, 1]} : vector<3x128xf32> to vector<1x128xf32>
    %44 = arith.mulf %35, %43 : vector<1x128xf32>
    %45 = arith.mulf %35, %35 : vector<1x128xf32>
    %46 = arith.mulf %45, %1 : vector<1x128xf32>
    %47 = arith.mulf %44, %2 : vector<1x128xf32>
    %48 = arith.addf %46, %47 : vector<1x128xf32>
    %c0_10 = arith.constant 0 : index
    %c0_11 = arith.constant 0 : index
    %49 = vector.load %arg5[%c0_10, %c0_11] : memref<2x128xf32, #tpu.memory_space<vmem>>, vector<1x128xf32>
    tpu.vector_store %arg5[%c0_10, %c0_11], %48 {strides = array<i32>} : memref<2x128xf32, #tpu.memory_space<vmem>>, vector<1x128xf32>,
    %50 = arith.mulf %44, %1 : vector<1x128xf32>
    %51 = arith.mulf %43, %43 : vector<1x128xf32>
    %52 = arith.mulf %42, %42 : vector<1x128xf32>
    %53 = arith.addf %51, %52 : vector<1x128xf32>
    %54 = arith.mulf %53, %2 : vector<1x128xf32>
    %55 = arith.addf %50, %54 : vector<1x128xf32>
    %c1 = arith.constant 1 : index
    %c0_12 = arith.constant 0 : index
    %56 = vector.load %arg5[%c1, %c0_12] : memref<2x128xf32, #tpu.memory_space<vmem>>, vector<1x128xf32>
    tpu.vector_store %arg5[%c1, %c0_12], %55 {strides = array<i32>} : memref<2x128xf32, #tpu.memory_space<vmem>>, vector<1x128xf32>,
    return
  }
  func.func @transform_0(%arg0: i32) -> (i32, i32) {
    %c0_i32 = arith.constant 0 : i32
    %c0_i32_0 = arith.constant 0 : i32
    return %c0_i32, %arg0 : i32, i32
  }
  func.func @transform_1(%arg0: i32) -> (i32, i32) {
    %c0_i32 = arith.constant 0 : i32
    %c0_i32_0 = arith.constant 0 : i32
    %c0_i32_1 = arith.constant 0 : i32
    return %c0_i32, %c0_i32_0 : i32, i32
  }
  func.func @transform_2(%arg0: i32) -> (i32, i32) {
    %c0_i32 = arith.constant 0 : i32
    %c0_i32_0 = arith.constant 0 : i32
    %c0_i32_1 = arith.constant 0 : i32
    return %c0_i32, %c0_i32_0 : i32, i32
  }
  func.func @transform_3(%arg0: i32) -> (i32, i32) {
    %c0_i32 = arith.constant 0 : i32
    %c0_i32_0 = arith.constant 0 : i32
    %c0_i32_1 = arith.constant 0 : i32
    return %c0_i32, %c0_i32_0 : i32, i32
  }
  func.func @transform_4(%arg0: i32) -> (i32, i32) {
    %c0_i32 = arith.constant 0 : i32
    %c0_i32_0 = arith.constant 0 : i32
    return %c0_i32, %arg0 : i32, i32
  }
}

</mosaic_0001>

<llo_original>
// kernel: damping_forward.1
$region0: #{damping_forward.1}
  #allocation0 [shape = 'u32[]', space=smem, size = 0x4, offset = 0x4, fixed_abs, tag = 'smem constant byte address 0x4 - core index']
  #allocation1 [shape = 'u32[144,128]{1,0:T(1,128)}', space=vmem, size = 0x12000, scoped, tag = 'internal scratch']
  %s0 = inlined_call_operand.vmem [shape: f32[2,128], index: 0, kind: input, shape index: {}]
  %s1 = inlined_call_operand.vmem [shape: f32[32,8], index: 1, kind: input, shape index: {}]
  %s2 = inlined_call_operand.vmem [shape: f32[32,32], index: 2, kind: input, shape index: {}]
  %s3 = inlined_call_operand.vmem [shape: f32[3,32], index: 3, kind: input, shape index: {}]
  %s4 = inlined_call_operand.vmem [shape: f32[2,128], index: 4, kind: output, shape index: {}]
  %s5 = sld [smem:[#allocation0]]
  $region26: #{damping_forward.1} parent=0
    _
  %s7 = ssub.s32 1, %s5
  %s8 = scalar_select 0, %s7, %s5
  // Predicated region
  $region2: #{damping_forward.1} parent=0 // pred_check
    _
  $region3: #{damping_forward.1} parent=0 // pred_check_branch
    %10 = sbr.rel (0) target = $region5
  $region4: #{damping_forward.1} parent=0 // pred_region
    _
  $region5: #{damping_forward.1} parent=0 // pred_fallthru
    _
  // Predicated region
  $region6: #{damping_forward.1} parent=0 // pred_check
    _
  $region7: #{damping_forward.1} parent=0 // pred_check_branch
    %12 = sbr.rel (0) target = $region9
  $region8: #{damping_forward.1} parent=0 // pred_region
    _
  $region9: #{damping_forward.1} parent=0 // pred_fallthru
    _
  // Predicated region
  $region10: #{damping_forward.1} parent=0 // pred_check
    _
  $region11: #{damping_forward.1} parent=0 // pred_check_branch
    %14 = sbr.rel (0) target = $region13
  $region12: #{damping_forward.1} parent=0 // pred_region
    _
  $region13: #{damping_forward.1} parent=0 // pred_fallthru
    _
  // Predicated region
  $region14: #{damping_forward.1} parent=0 // pred_check
    _
  $region15: #{damping_forward.1} parent=0 // pred_check_branch
    %16 = sbr.rel (0) target = $region17
  $region16: #{damping_forward.1} parent=0 // pred_region
    _
  $region17: #{damping_forward.1} parent=0 // pred_fallthru
    _
  %v17 = vld [vmem:[%s0] sm:$0x3]
  %v18 = vld [vmem:[%s1] sm:$0xff]
  %v19 = vld [vmem:[%s1 + $0x8] sm:$0xff]
  %v20 = vld [vmem:[%s1 + $0x10] sm:$0xff]
  %v21 = vld [vmem:[%s1 + $0x18] sm:$0xff]
  %23 = vset.pattern.permute.xlu0 0
  %24 = vperm.xlu0 %23, %v18
  %v25 = vpop.permute.xlu0 %24
  %28 = vset.pattern.permute.xlu0 0
  %29 = vperm.xlu0 %28, %v19
  %v30 = vpop.permute.xlu0 %29
  %33 = vset.pattern.permute.xlu0 0
  %34 = vperm.xlu0 %33, %v20
  %v35 = vpop.permute.xlu0 %34
  %38 = vset.pattern.permute.xlu0 0
  %39 = vperm.xlu0 %38, %v21
  %v40 = vpop.permute.xlu0 %39
  %v42 = vlaneseq
  %v43 = vshrl.u32 %v42, 7
  %v44 = vsub.s32 0, %v43
  %v45 = vrot.slane %v17, %v44
  %v46 = vmul.f32 %v25, %v45
  %v47 = vmul.f32 %v30, %v45
  %v48 = vmul.f32 %v35, %v45
  %v49 = vmul.f32 %v40, %v45
  %50 = vset.pattern.permute.xlu0 1
  %51 = vperm.xlu0 %50, %v18
  %v52 = vpop.permute.xlu0 %51
  %54 = vset.pattern.permute.xlu0 1
  %55 = vperm.xlu0 %54, %v19
  %v56 = vpop.permute.xlu0 %55
  %58 = vset.pattern.permute.xlu0 1
  %59 = vperm.xlu0 %58, %v20
  %v60 = vpop.permute.xlu0 %59
  %62 = vset.pattern.permute.xlu0 1
  %63 = vperm.xlu0 %62, %v21
  %v64 = vpop.permute.xlu0 %63
  %v66 = vlaneseq
  %v67 = vshrl.u32 %v66, 7
  %v68 = vsub.s32 1, %v67
  %v69 = vrot.slane %v17, %v68
  %v70 = vmul.f32 %v52, %v69
  %v71 = vmul.f32 %v56, %v69
  %v72 = vmul.f32 %v60, %v69
  %v73 = vmul.f32 %v64, %v69
  %v74 = vadd.f32 %v46, %v70
  %v75 = vadd.f32 %v47, %v71
  %v76 = vadd.f32 %v48, %v72
  %v77 = vadd.f32 %v49, %v73
  %78 = vset.pattern.permute.xlu0 2
  %79 = vperm.xlu0 %78, %v18
  %v80 = vpop.permute.xlu0 %79
  %82 = vset.pattern.permute.xlu0 2
  %83 = vperm.xlu0 %82, %v19
  %v84 = vpop.permute.xlu0 %83
  %86 = vset.pattern.permute.xlu0 2
  %87 = vperm.xlu0 %86, %v20
  %v88 = vpop.permute.xlu0 %87
  %90 = vset.pattern.permute.xlu0 2
  %91 = vperm.xlu0 %90, %v21
  %v92 = vpop.permute.xlu0 %91
  %v94 = vadd.f32 %v74, %v80
  %v95 = vadd.f32 %v75, %v84
  %v96 = vadd.f32 %v76, %v88
  %v97 = vadd.f32 %v77, %v92
  %v98 = vtanh.pop %v94
  %v99 = vtanh.pop %v95
  %v100 = vtanh.pop %v96
  %v101 = vtanh.pop %v97
  %v102 = vld [vmem:[%s2] sm:$0xff]
  %v103 = vld [vmem:[%s2 + $0x8] sm:$0xff]
  %v104 = vld [vmem:[%s2 + $0x10] sm:$0xff]
  %v105 = vld [vmem:[%s2 + $0x18] sm:$0xff]
  %106 = vset.pattern.permute.xlu0 3
  %107 = vperm.xlu0 %106, %v18
  %v108 = vpop.permute.xlu0 %107
  %110 = vset.pattern.permute.xlu0 3
  %111 = vperm.xlu0 %110, %v19
  %v112 = vpop.permute.xlu0 %111
  %114 = vset.pattern.permute.xlu0 3
  %115 = vperm.xlu0 %114, %v20
  %v116 = vpop.permute.xlu0 %115
  %118 = vset.pattern.permute.xlu0 3
  %119 = vperm.xlu0 %118, %v21
  %v120 = vpop.permute.xlu0 %119
  %vm122 = vcmask 261120
  %v124 = vsel %vm122, %v102, 0
  %v127 = vsel %vm122, %v103, 0
  %v130 = vsel %vm122, %v104, 0
  %v133 = vsel %vm122, %v105, 0
  %135 = vmatprep.subr.mxu0 0.0
  %136 = vmatpush1.msra.mxu0 %v98
  %137 = vmatprep.subr.mxu0 0.0
  %138 = vmatpush1.msra.mxu0 %v99
  %139 = vmatprep.subr.mxu0 0.0
  %140 = vmatpush1.msra.mxu0 %v100
  %141 = vmatprep.subr.mxu0 0.0
  %142 = vmatpush1.msra.mxu0 %v101
  %143 = vmatprep.subr.mxu0 0.0
  %144 = vmatpush1.msra.mxu0 0.0
  %145 = vmatprep.subr.mxu0 0.0
  %146 = vmatpush1.msra.mxu0 0.0
  %147 = vmatprep.subr.mxu0 0.0
  %148 = vmatpush1.msra.mxu0 0.0
  %149 = vmatprep.subr.mxu0 0.0
  %150 = vmatpush1.msra.mxu0 0.0
  %151 = vmatprep.subr.mxu0 0.0
  %152 = vmatpush1.msra.mxu0 0.0
  %153 = vmatprep.subr.mxu0 0.0
  %154 = vmatpush1.msra.mxu0 0.0
  %155 = vmatprep.subr.mxu0 0.0
  %156 = vmatpush1.msra.mxu0 0.0
  %157 = vmatprep.subr.mxu0 0.0
  %158 = vmatpush1.msra.mxu0 0.0
  %159 = vmatprep.subr.mxu0 0.0
  %160 = vmatpush1.msra.mxu0 0.0
  %161 = vmatprep.subr.mxu0 0.0
  %162 = vmatpush1.msra.mxu0 0.0
  %163 = vmatprep.subr.mxu0 0.0
  %164 = vmatpush1.msra.mxu0 0.0
  %165 = vmatprep.subr.mxu0 0.0
  %166 = vmatpush1.msra.mxu0 0.0
  %167 = vmatprep.subr.mxu0 0.0
  %168 = vmatpush1.msra.mxu0 0.0
  %169 = vmatprep.subr.mxu0 0.0
  %170 = vmatpush1.msra.mxu0 0.0
  %171 = vmatprep.subr.mxu0 0.0
  %172 = vmatpush1.msra.mxu0 0.0
  %173 = vmatprep.subr.mxu0 0.0
  %174 = vmatpush1.msra.mxu0 0.0
  %175 = vmatprep.subr.mxu0 0.0
  %176 = vmatpush1.msra.mxu0 0.0
  %177 = vmatprep.subr.mxu0 0.0
  %178 = vmatpush1.msra.mxu0 0.0
  %179 = vmatprep.subr.mxu0 0.0
  %180 = vmatpush1.msra.mxu0 0.0
  %181 = vmatprep.subr.mxu0 0.0
  %182 = vmatpush1.msra.mxu0 0.0
  %183 = vmatprep.subr.mxu0 0.0
  %184 = vmatpush1.msra.mxu0 0.0
  %185 = vmatprep.subr.mxu0 0.0
  %186 = vmatpush1.msra.mxu0 0.0
  %187 = vmatprep.subr.mxu0 0.0
  %188 = vmatpush1.msra.mxu0 0.0
  %189 = vmatprep.subr.mxu0 0.0
  %190 = vmatpush1.msra.mxu0 0.0
  %191 = vmatprep.subr.mxu0 0.0
  %192 = vmatpush1.msra.mxu0 0.0
  %193 = vmatprep.subr.mxu0 0.0
  %194 = vmatpush1.msra.mxu0 0.0
  %195 = vmatprep.subr.mxu0 0.0
  %196 = vmatpush1.msra.mxu0 0.0
  %197 = vmatprep.subr.mxu0 0.0
  %198 = vmatpush1.msra.mxu0 0.0
  %199 = vmatprep.mubr.f32.mxu0 0.0
  %200 = vmatmul.mubr.f32.gmra.mrb[0].mxu0 %v124
  %v201 = vpop.f32.mrb[0].mxu0
  %v202 = vadd.f32 %v108, %v201
  %v203 = vpop.f32.mrb[0].mxu0
  %204 = vmatprep.mubr.f32.mxu0 0.0
  %205 = vmatmul.mubr.f32.gmra.mrb[0].mxu0 %v127
  %v206 = vpop.f32.mrb[0].mxu0
  %v207 = vadd.f32 %v112, %v206
  %v208 = vpop.f32.mrb[0].mxu0
  %209 = vmatprep.mubr.f32.mxu0 0.0
  %210 = vmatmul.mubr.f32.gmra.mrb[0].mxu0 %v130
  %v211 = vpop.f32.mrb[0].mxu0
  %v212 = vadd.f32 %v116, %v211
  %v213 = vpop.f32.mrb[0].mxu0
  %214 = vmatprep.mubr.f32.mxu0 0.0
  %215 = vmatmul.mubr.f32.gmra.mrb[0].mxu0 %v133
  %v216 = vpop.f32.mrb[0].mxu0
  %v217 = vadd.f32 %v120, %v216
  %v218 = vpop.f32.mrb[0].mxu0
  %219 = vdwg.mxu0
  %v220 = vtanh.pop %v202
  %v221 = vtanh.pop %v207
  %v222 = vtanh.pop %v212
  %v223 = vtanh.pop %v217
  %v224 = vld [vmem:[%s3] sm:$0x7]
  %225 = vset.pattern.permute.xlu0 4
  %226 = vperm.xlu0 %225, %v18
  %v227 = vpop.permute.xlu0 %226
  %v230 = vsel %vm122, %v224, 0
  %232 = vmatprep.subr.mxu0 0.0
  %233 = vmatpush1.msra.mxu0 %v220
  %234 = vmatprep.subr.mxu0 0.0
  %235 = vmatpush1.msra.mxu0 %v221
  %236 = vmatprep.subr.mxu0 0.0
  %237 = vmatpush1.msra.mxu0 %v222
  %238 = vmatprep.subr.mxu0 0.0
  %239 = vmatpush1.msra.mxu0 %v223
  %240 = vmatprep.subr.mxu0 0.0
  %241 = vmatpush1.msra.mxu0 0.0
  %242 = vmatprep.subr.mxu0 0.0
  %243 = vmatpush1.msra.mxu0 0.0
  %244 = vmatprep.subr.mxu0 0.0
  %245 = vmatpush1.msra.mxu0 0.0
  %246 = vmatprep.subr.mxu0 0.0
  %247 = vmatpush1.msra.mxu0 0.0
  %248 = vmatprep.subr.mxu0 0.0
  %249 = vmatpush1.msra.mxu0 0.0
  %250 = vmatprep.subr.mxu0 0.0
  %251 = vmatpush1.msra.mxu0 0.0
  %252 = vmatprep.subr.mxu0 0.0
  %253 = vmatpush1.msra.mxu0 0.0
  %254 = vmatprep.subr.mxu0 0.0
  %255 = vmatpush1.msra.mxu0 0.0
  %256 = vmatprep.subr.mxu0 0.0
  %257 = vmatpush1.msra.mxu0 0.0
  %258 = vmatprep.subr.mxu0 0.0
  %259 = vmatpush1.msra.mxu0 0.0
  %260 = vmatprep.subr.mxu0 0.0
  %261 = vmatpush1.msra.mxu0 0.0
  %262 = vmatprep.subr.mxu0 0.0
  %263 = vmatpush1.msra.mxu0 0.0
  %264 = vmatprep.subr.mxu0 0.0
  %265 = vmatpush1.msra.mxu0 0.0
  %266 = vmatprep.subr.mxu0 0.0
  %267 = vmatpush1.msra.mxu0 0.0
  %268 = vmatprep.subr.mxu0 0.0
  %269 = vmatpush1.msra.mxu0 0.0
  %270 = vmatprep.subr.mxu0 0.0
  %271 = vmatpush1.msra.mxu0 0.0
  %272 = vmatprep.subr.mxu0 0.0
  %273 = vmatpush1.msra.mxu0 0.0
  %274 = vmatprep.subr.mxu0 0.0
  %275 = vmatpush1.msra.mxu0 0.0
  %276 = vmatprep.subr.mxu0 0.0
  %277 = vmatpush1.msra.mxu0 0.0
  %278 = vmatprep.subr.mxu0 0.0
  %279 = vmatpush1.msra.mxu0 0.0
  %280 = vmatprep.subr.mxu0 0.0
  %281 = vmatpush1.msra.mxu0 0.0
  %282 = vmatprep.subr.mxu0 0.0
  %283 = vmatpush1.msra.mxu0 0.0
  %284 = vmatprep.subr.mxu0 0.0
  %285 = vmatpush1.msra.mxu0 0.0
  %286 = vmatprep.subr.mxu0 0.0
  %287 = vmatpush1.msra.mxu0 0.0
  %288 = vmatprep.subr.mxu0 0.0
  %289 = vmatpush1.msra.mxu0 0.0
  %290 = vmatprep.subr.mxu0 0.0
  %291 = vmatpush1.msra.mxu0 0.0
  %292 = vmatprep.subr.mxu0 0.0
  %293 = vmatpush1.msra.mxu0 0.0
  %294 = vmatprep.subr.mxu0 0.0
  %295 = vmatpush1.msra.mxu0 0.0
  %296 = vmatprep.mubr.f32.mxu0 0.0
  %297 = vmatmul.mubr.f32.gmra.mrb[0].mxu0 %v230
  %v298 = vpop.f32.mrb[0].mxu0
  %v299 = vadd.f32 %v227, %v298
  %v300 = vpop.f32.mrb[0].mxu0
  %301 = vdwg.mxu0
  %v302 = vmax.f32 %v299, 0.0
  %303 = vset.pattern.permute.xlu0 5
  %304 = vperm.xlu0 %303, %v18
  %v305 = vpop.permute.xlu0 %304
  %v307 = vadd.f32 %v302, %v305
  %v308 = vmul.f32 %v307, %v17
  %v310 = vrot.slane %v299, 2
  %v312 = vmul.f32 %v308, %v310
  %v313 = vmul.f32 %v308, %v308
  %v314 = vmul.f32 %v313, %v17
  %v316 = vrot.slane %v17, 1
  %v318 = vmul.f32 %v312, %v316
  %v319 = vadd.f32 %v314, %v318
  %320 = vst [vmem:[%s4] sm:$0x1] %v319
  %v321 = vmul.f32 %v312, %v17
  %v322 = vmul.f32 %v299, %v299
  %v324 = vrot.slane %v313, 7
  %v326 = vadd.f32 %v322, %v324
  %v327 = vrot.slane %v17, 7
  %v329 = vmul.f32 %v326, %v327
  %v331 = vrot.slane %v329, 2
  %v333 = vadd.f32 %v321, %v331
  %334 = vst [vmem:[%s4 + $0x1] sm:$0x1] %v333
  // Predicated region
  $region18: #{damping_forward.1} parent=0 // pred_check
    _
  $region19: #{damping_forward.1} parent=0 // pred_check_branch
    %336 = sbr.rel (0) target = $region21
  $region20: #{damping_forward.1} parent=0 // pred_region
    _
  $region21: #{damping_forward.1} parent=0 // pred_fallthru
    _
  // Predicated region
  $region22: #{damping_forward.1} parent=0 // pred_check
    _
  $region23: #{damping_forward.1} parent=0 // pred_check_branch
    %338 = sbr.rel (0) target = $region25
  $region24: #{damping_forward.1} parent=0 // pred_region
    _
  $region25: #{damping_forward.1} parent=0 // pred_fallthru
    _

</llo_original>
